<compile_context>
chip_gen: v7x
topology: tpu7x:2x2x1
jax: 0.10.0
libtpu: 0.0.40
codegen_flags: <defaults>
</compile_context>

<pallas_src>
import jax
import jax.numpy as jnp
from jax import lax
from jax.experimental import pallas as pl
from jax.experimental.pallas import tpu as pltpu

HIDDEN = 768          # hard-coded in the PyTorch module (Linear(768, ...))
NUM_CLASSES = 3
NSEG = 5              # s1..s5 pooled vectors
NSEG_PAD = 8          # padded to the sublane granule / MXU-friendly width
BN_EPS = 1e-5


def _temporal_head_kernel(bounds_ref, x_ref, w_eff_ref, b_eff_ref,
                          fcw_ref, aux_ref, o_ref):
    """One example per grid step.

    bounds_ref : SMEM  [B, 5] i32  (s2_start, s2_end, s4_start, s4_end, L)
    x_ref      : VMEM  [1, Lp, H]  bf16  raw encoder output (pre-ReLU), zero-pad rows
    w_eff_ref  : VMEM  [8, H]      bf16  fused Linear+Conv1d score vectors (rows 0,2,4)
    b_eff_ref  : VMEM  [8, 1]      f32   fused score biases (rows 0,2,4)
    fcw_ref    : VMEM  [3, 8, H]   f32   class-major fc weights, gamma-folded, zero pad rows
    aux_ref    : VMEM  [3, 2]      f32   col0 = gamma*sum(fc_w), col1 = fc_b + beta*sum(fc_w)
    o_ref      : VMEM  [1, 3, 1]   f32   class probabilities
    """
    b = pl.program_id(0)
    Lp = x_ref.shape[1]

    s2s = bounds_ref[b, 0]
    s2e = bounds_ref[b, 1]
    s4s = bounds_ref[b, 2]
    s4e = bounds_ref[b, 3]
    seq_len = bounds_ref[b, 4]

    # ReLU is applied to the encoder output before slicing in the torch code;
    # it is elementwise, so applying it to the whole (zero-padded) slab is identical.
    relu_x = jnp.maximum(x_ref[0], 0.0)                               # [Lp, H] bf16

    # --- MXU pass 1: attention scores for all three branches at once -------
    # scores_T[s, t] = relu_x[t] . w_eff[s]   (rows 0,2,4 = branches s1,s3,s5)
    scores_t = lax.dot_general(w_eff_ref[...], relu_x,
                               (((1,), (1,)), ((), ())),
                               preferred_element_type=jnp.float32)    # [8, Lp]

    # --- segment masks driven by runtime boundary scalars (SMEM) -----------
    seg = lax.broadcasted_iota(jnp.int32, (NSEG_PAD, 1), 0)           # [8, 1]
    pos = lax.broadcasted_iota(jnp.int32, (NSEG_PAD, Lp), 1)          # [8, Lp]

    lo = jnp.where(seg == 0, 0,
         jnp.where(seg == 1, s2s,
         jnp.where(seg == 2, s2e,
         jnp.where(seg == 3, s4s,
         jnp.where(seg == 4, s4e, seq_len)))))                        # [8, 1]
    hi = jnp.where(seg == 0, s2s,
         jnp.where(seg == 1, s2e,
         jnp.where(seg == 2, s4s,
         jnp.where(seg == 3, s4e, seq_len))))                         # [8, 1]
    mask = (pos >= lo) & (pos < hi)                                   # [8, Lp]

    cnt = (hi - lo).astype(jnp.float32)
    # TODO(synk): an empty mean-pool segment (cnt==0) is NaN in torch (caught
    # by its isnan guard -> None); here we clamp and emit a zero vector instead.
    inv_cnt = 1.0 / jnp.maximum(cnt, 1.0)                             # [8, 1]
    is_mean = (seg == 1) | (seg == 3)                                 # [8, 1]

    # rows 0,2,4: masked attention scores (+bias); rows 1,3: 1/cnt mean masks;
    # rows 5..7: zero padding.
    w_rows = jnp.where(is_mean, inv_cnt, scores_t + b_eff_ref[...])   # [8, Lp]
    w_rows = jnp.where(mask, w_rows, 0.0).astype(relu_x.dtype)        # bf16

    # --- MXU pass 2: all five pooled vectors, sublane-stacked --------------
    pooled = jnp.dot(w_rows, relu_x,
                     preferred_element_type=jnp.float32)              # [8, H] f32
    # rows 0..4 = [s1_att, s2_mean, s3_att, s4_mean, s5_att]; rows 5..7 exactly 0.

    # --- BatchNorm1d(1), training-mode stats over this example's 5*H values.
    # The affine (gamma, beta) is folded into fcw_ref / aux_ref.
    inv_n = 1.0 / float(NSEG * HIDDEN)
    mu = jnp.sum(pooled) * inv_n
    var = jnp.maximum(jnp.sum(pooled * pooled) * inv_n - mu * mu, 0.0)
    inv_std = lax.rsqrt(var + BN_EPS)

    # --- fc(5*768 -> 3): one broadcast multiply-reduce vs class-major weights
    prod = fcw_ref[...] * pooled[None]                                # [3, 8, H]
    d = jnp.sum(jnp.sum(prod, axis=2), axis=1, keepdims=True)         # [3, 1]

    gwsum = aux_ref[:, 0:1]                                           # [3, 1]
    fcb = aux_ref[:, 1:2]                                             # [3, 1]
    logits = inv_std * (d - mu * gwsum) + fcb                         # [3, 1]

    # Softmax(dim=1) over the 3 classes (denominator on the EUP).
    z = logits - jnp.max(logits, axis=0, keepdims=True)
    e = jnp.exp(z)
    denom = jnp.sum(e, axis=0, keepdims=True)
    probs = e * pl.reciprocal(denom, approx=True)                     # [3, 1]
    o_ref[...] = probs[None]                                          # [1, 3, 1]


def fuse_params(params):
    """One-time precompute of kernel-ready (fused) parameters.

    Exact algebra:
      * Linear(768,768)+Transpose+Conv1d(768,1,1) collapse per branch into a
        [768] score vector + scalar bias:  score = x.(W@wc) + (b.wc + bc).
      * BatchNorm1d(1)'s affine and mean-correction are folded into fc:
        logits_k = inv_std*(d_k - mu*gamma*sum(fc_w[:,k])) + fc_b_k + beta*sum(fc_w[:,k])
        with d_k = sum(sentence * gamma*fc_w[:,k]).
    """
    H = HIDDEN
    w_att = params["w_att"]                      # [3, H, H]  (used as x @ w_att[i])
    b_att = params["b_att"][:, 0, :]             # [3, H]
    wc = params["wc"][:, 0, :]                   # [3, H]
    bc = params["bc"]                            # [3]
    gamma = params["bn"][0]
    beta = params["bn"][1]
    fc_w = params["fc_w"]                        # [5H, 3]
    fc_b = params["fc_b"].reshape(-1)            # [3]

    w_eff = jnp.einsum("khf,kf->kh", w_att, wc)          # [3, H]
    b_eff = jnp.einsum("kf,kf->k", b_att, wc) + bc       # [3]

    # Scatter the three branch vectors into segment rows 0, 2, 4 of a padded layout.
    w_eff_t = jnp.zeros((NSEG_PAD, H), jnp.float32)
    b_eff_col = jnp.zeros((NSEG_PAD, 1), jnp.float32)
    for k, s in enumerate((0, 2, 4)):
        w_eff_t = w_eff_t.at[s].set(w_eff[k])
        b_eff_col = b_eff_col.at[s, 0].set(b_eff[k])

    # Class-major fc weights with the BN affine folded in, padded to 8 segment rows.
    fcw = jnp.transpose(fc_w.reshape(NSEG, H, NUM_CLASSES), (2, 0, 1))   # [3,5,H]
    fcw_g = jnp.zeros((NUM_CLASSES, NSEG_PAD, H), jnp.float32)
    fcw_g = fcw_g.at[:, :NSEG, :].set(gamma * fcw)
    wsum = jnp.sum(fc_w, axis=0)                          # [3]
    aux = jnp.stack([gamma * wsum, fc_b + beta * wsum], axis=1)          # [3, 2]

    return {
        "w_eff_t": w_eff_t.astype(jnp.bfloat16),          # [8, H]
        "b_eff_col": b_eff_col.astype(jnp.float32),       # [8, 1]
        "fcw_g": fcw_g.astype(jnp.float32),               # [3, 8, H]
        "aux": aux.astype(jnp.float32),                   # [3, 2]
    }


def roberta_temporal_head(embed, boundaries, fused):
    """embed: [B, L, HIDDEN] raw encoder output (pre-ReLU), any float dtype.
    boundaries: list of B tuples (s2_start, s2_end, s4_start, s4_end), Python ints.

    The boundary guard below mirrors the torch forward and needs concrete ints;
    the kernel itself reads the per-example boundaries from SMEM at runtime, so
    changing them does NOT retrace or recompile.
    """
    B, L, H = embed.shape
    assert H == HIDDEN
    for (s2s, _s2e, _s4s, s4e) in boundaries:
        if s2s < 2 or s4e > L - 2:       # same guard as the torch forward
            return None

    Lp = ((L + 15) // 16) * 16           # bf16 sublane granule
    x = embed.astype(jnp.bfloat16)       # halve HBM->VMEM traffic for the slab
    if Lp != L:
        x = jnp.pad(x, ((0, 0), (0, Lp - L), (0, 0)))
    bounds = jnp.asarray(
        [[s2s, s2e, s4s, s4e, L] for (s2s, s2e, s4s, s4e) in boundaries],
        dtype=jnp.int32)

    grid_spec = pltpu.PrefetchScalarGridSpec(
        num_scalar_prefetch=1,
        grid=(B,),
        in_specs=[
            pl.BlockSpec((1, Lp, HIDDEN), lambda b, bnd: (b, 0, 0)),
            pl.BlockSpec((NSEG_PAD, HIDDEN), lambda b, bnd: (0, 0)),
            pl.BlockSpec((NSEG_PAD, 1), lambda b, bnd: (0, 0)),
            pl.BlockSpec((NUM_CLASSES, NSEG_PAD, HIDDEN), lambda b, bnd: (0, 0, 0)),
            pl.BlockSpec((NUM_CLASSES, 2), lambda b, bnd: (0, 0)),
        ],
        out_specs=pl.BlockSpec((1, NUM_CLASSES, 1), lambda b, bnd: (b, 0, 0)),
    )

    out = pl.pallas_call(
        _temporal_head_kernel,
        out_shape=jax.ShapeDtypeStruct((B, NUM_CLASSES, 1), jnp.float32),
        grid_spec=grid_spec,
        compiler_params=pltpu.CompilerParams(
            dimension_semantics=("parallel",),
            vmem_limit_bytes=32 * 1024 * 1024),
    )(bounds, x, fused["w_eff_t"], fused["b_eff_col"], fused["fcw_g"], fused["aux"])

    # TODO(synk): the torch module's isnan(fc-output) -> return None guard is
    # left to the caller (checked host-side in __main__).
    return out[:, :, 0]                  # [B, 3]


def _reference(embed, boundaries, p):
    """Plain-JAX per-example reference of the same forward, UNFUSED parameters."""
    outs = []
    for i, (s2s, s2e, s4s, s4e) in enumerate(boundaries):
        e = jnp.maximum(embed[i], 0.0)

        def attend(x, k):
            h = x @ p["w_att"][k] + p["b_att"][k]
            scores = jnp.sum(h * p["wc"][k], axis=1, keepdims=True) + p["bc"][k]
            return scores.T @ x

        v1 = attend(e[:s2s], 0)
        v2 = jnp.mean(e[s2s:s2e], axis=0, keepdims=True)
        v3 = attend(e[s2e:s4s], 1)
        v4 = jnp.mean(e[s4s:s4e], axis=0, keepdims=True)
        v5 = attend(e[s4e:], 2)
        sent = jnp.concatenate([v1, v2, v3, v4, v5], axis=1)
        mu = jnp.mean(sent)
        var = jnp.mean((sent - mu) ** 2)
        sb = (sent - mu) / jnp.sqrt(var + BN_EPS) * p["bn"][0] + p["bn"][1]
        logits = sb @ p["fc_w"] + p["fc_b"]
        outs.append(jax.nn.softmax(logits, axis=1)[0])
    return jnp.stack(outs, axis=0)


if __name__ == "__main__":
    key = jax.random.PRNGKey(0)
    k_emb, k_ids, k_w, k_b, k_wc, k_bc, k_fcw, k_fcb = jax.random.split(key, 8)

    B, L, VOCAB = 4, 24, 100
    boundaries = [(4, 8, 12, 18), (2, 5, 9, 20), (3, 7, 11, 16), (5, 10, 14, 22)]

    # TODO(synk): the pretrained RobertaModel encoder / tokenizer has no clean
    # in-script equivalent; a deterministic embedding-table lookup stands in
    # for its last_hidden_state ([B, L, 768]).
    input_ids = jax.random.randint(k_ids, (B, L), 0, VOCAB)
    attention_mask = jnp.ones((B, L), jnp.float32)
    embed_table = jax.random.normal(k_emb, (VOCAB, HIDDEN), jnp.float32)
    embed = embed_table[input_ids] * attention_mask[..., None]      # [B, L, 768]

    params = {
        # weights stored pre-transposed so the math is x @ W
        "w_att": 0.02 * jax.random.normal(k_w, (3, HIDDEN, HIDDEN), jnp.float32),
        "b_att": 0.02 * jax.random.normal(k_b, (3, 1, HIDDEN), jnp.float32),
        "wc":    0.02 * jax.random.normal(k_wc, (3, 1, HIDDEN), jnp.float32),
        "bc":    0.02 * jax.random.normal(k_bc, (3,), jnp.float32),
        "bn":    jnp.array([0.9, 0.1], jnp.float32),     # non-trivial gamma/beta
        "fc_w":  0.05 * jax.random.normal(k_fcw, (5 * HIDDEN, NUM_CLASSES), jnp.float32),
        "fc_b":  0.1 * jax.random.normal(k_fcb, (1, NUM_CLASSES), jnp.float32),
    }

    fused = fuse_params(params)          # one-time; zero per-call weight math

    out = roberta_temporal_head(embed, boundaries, fused)
    out = jax.block_until_ready(out)

    # Reference consumes the same bf16-quantized activations the kernel sees;
    # remaining tolerance covers bf16 score weights and f32 reassociation.
    embed_q = embed.astype(jnp.bfloat16).astype(jnp.float32)
    ref = _reference(embed_q, boundaries, params)

    assert out.shape == (B, NUM_CLASSES)
    assert not bool(jnp.any(jnp.isnan(out)))     # torch isnan guard, host-side
    assert jnp.allclose(out, ref, rtol=5e-2, atol=2e-2), (out, ref)
    print("KERNEL_OK")
</pallas_src>

<mosaic_0001>
module attributes {stable_mosaic.version = 11 : i64} {
  func.func @_temporal_head_kernel(%arg0: i32, %arg1: memref<4x5xi32, #tpu.memory_space<smem>>, %arg2: memref<1x32x768xbf16, #tpu.memory_space<vmem>>, %arg3: memref<8x768xbf16, #tpu.memory_space<vmem>>, %arg4: memref<8x1xf32, #tpu.memory_space<vmem>>, %arg5: memref<3x8x768xf32, #tpu.memory_space<vmem>>, %arg6: memref<3x2xf32, #tpu.memory_space<vmem>>, %arg7: memref<1x3x1xf32, #tpu.memory_space<vmem>>) attributes {dimension_semantics = [#tpu.dimension_semantics<parallel>], iteration_bounds = array<i64: 4>, scalar_prefetch = 1 : i64, scratch_operands = 0 : i64, tpu.core_type = #tpu.core_type<tc>, window_params = [{transform_indices = @transform_0, window_bounds = array<i64: 1, 32, 768>}, {pipeline_mode = #tpu.pipeline_mode<synchronous>, transform_indices = @transform_1, window_bounds = array<i64: 8, 768>}, {pipeline_mode = #tpu.pipeline_mode<synchronous>, transform_indices = @transform_2, window_bounds = array<i64: 8, 1>}, {pipeline_mode = #tpu.pipeline_mode<synchronous>, transform_indices = @transform_3, window_bounds = array<i64: 3, 8, 768>}, {pipeline_mode = #tpu.pipeline_mode<synchronous>, transform_indices = @transform_4, window_bounds = array<i64: 3, 2>}, {transform_indices = @transform_5, window_bounds = array<i64: 1, 3, 1>}]} {
    %0 = arith.index_cast %arg0 : i32 to index
    %c0 = arith.constant 0 : index
    %1 = memref.load %arg1[%0, %c0] : memref<4x5xi32, #tpu.memory_space<smem>>
    %2 = arith.index_cast %arg0 : i32 to index
    %c1 = arith.constant 1 : index
    %3 = memref.load %arg1[%2, %c1] : memref<4x5xi32, #tpu.memory_space<smem>>
    %4 = arith.index_cast %arg0 : i32 to index
    %c2 = arith.constant 2 : index
    %5 = memref.load %arg1[%4, %c2] : memref<4x5xi32, #tpu.memory_space<smem>>
    %6 = arith.index_cast %arg0 : i32 to index
    %c3 = arith.constant 3 : index
    %7 = memref.load %arg1[%6, %c3] : memref<4x5xi32, #tpu.memory_space<smem>>
    %8 = arith.index_cast %arg0 : i32 to index
    %c4 = arith.constant 4 : index
    %9 = memref.load %arg1[%8, %c4] : memref<4x5xi32, #tpu.memory_space<smem>>
    %c0_0 = arith.constant 0 : index
    %c0_1 = arith.constant 0 : index
    %c0_2 = arith.constant 0 : index
    %10 = vector.load %arg2[%c0_0, %c0_1, %c0_2] : memref<1x32x768xbf16, #tpu.memory_space<vmem>>, vector<1x32x768xbf16>
    %11 = vector.shape_cast %10 : vector<1x32x768xbf16> to vector<32x768xbf16>
    %cst = arith.constant 0.000000e+00 : bf16
    %12 = vector.broadcast %cst : bf16 to vector<32x768xbf16>
    %13 = arith.maximumf %11, %12 : vector<32x768xbf16>
    %c0_3 = arith.constant 0 : index
    %c0_4 = arith.constant 0 : index
    %14 = vector.load %arg3[%c0_3, %c0_4] : memref<8x768xbf16, #tpu.memory_space<vmem>>, vector<8x768xbf16>
    %cst_5 = arith.constant dense<0.000000e+00> : vector<8x32xf32>
    %15 = tpu.matmul %14, %13, %cst_5 {dimension_numbers = #tpu.dot_dimension_numbers<[1], [1], [0], [0], [0, 0, 1, 0], [], []>} : vector<8x768xbf16>, vector<32x768xbf16>, vector<8x32xf32> -> vector<8x32xf32>
    %16 = tpu.iota {dimensions = array<i32: 0>} : vector<8x1xi32>
    %17 = tpu.iota {dimensions = array<i32: 1>} : vector<8x32xi32>
    %c0_i32 = arith.constant 0 : i32
    %18 = vector.broadcast %c0_i32 : i32 to vector<8x1xi32>
    %19 = arith.cmpi eq, %16, %18 : vector<8x1xi32>
    %c1_i32 = arith.constant 1 : i32
    %20 = vector.broadcast %c1_i32 : i32 to vector<8x1xi32>
    %21 = arith.cmpi eq, %16, %20 : vector<8x1xi32>
    %c2_i32 = arith.constant 2 : i32
    %22 = vector.broadcast %c2_i32 : i32 to vector<8x1xi32>
    %23 = arith.cmpi eq, %16, %22 : vector<8x1xi32>
    %c3_i32 = arith.constant 3 : i32
    %24 = vector.broadcast %c3_i32 : i32 to vector<8x1xi32>
    %25 = arith.cmpi eq, %16, %24 : vector<8x1xi32>
    %c4_i32 = arith.constant 4 : i32
    %26 = vector.broadcast %c4_i32 : i32 to vector<8x1xi32>
    %27 = arith.cmpi eq, %16, %26 : vector<8x1xi32>
    %28 = vector.broadcast %7 : i32 to vector<8x1xi32>
    %29 = vector.broadcast %9 : i32 to vector<8x1xi32>
    %30 = arith.select %27, %28, %29 : vector<8x1xi1>, vector<8x1xi32>
    %31 = vector.broadcast %5 : i32 to vector<8x1xi32>
    %32 = arith.select %25, %31, %30 : vector<8x1xi1>, vector<8x1xi32>
    %33 = vector.broadcast %3 : i32 to vector<8x1xi32>
    %34 = arith.select %23, %33, %32 : vector<8x1xi1>, vector<8x1xi32>
    %35 = vector.broadcast %1 : i32 to vector<8x1xi32>
    %36 = arith.select %21, %35, %34 : vector<8x1xi1>, vector<8x1xi32>
    %c0_i32_6 = arith.constant 0 : i32
    %37 = vector.broadcast %c0_i32_6 : i32 to vector<8x1xi32>
    %38 = arith.select %19, %37, %36 : vector<8x1xi1>, vector<8x1xi32>
    %c0_i32_7 = arith.constant 0 : i32
    %39 = vector.broadcast %c0_i32_7 : i32 to vector<8x1xi32>
    %40 = arith.cmpi eq, %16, %39 : vector<8x1xi32>
    %c1_i32_8 = arith.constant 1 : i32
    %41 = vector.broadcast %c1_i32_8 : i32 to vector<8x1xi32>
    %42 = arith.cmpi eq, %16, %41 : vector<8x1xi32>
    %c2_i32_9 = arith.constant 2 : i32
    %43 = vector.broadcast %c2_i32_9 : i32 to vector<8x1xi32>
    %44 = arith.cmpi eq, %16, %43 : vector<8x1xi32>
    %c3_i32_10 = arith.constant 3 : i32
    %45 = vector.broadcast %c3_i32_10 : i32 to vector<8x1xi32>
    %46 = arith.cmpi eq, %16, %45 : vector<8x1xi32>
    %47 = vector.broadcast %7 : i32 to vector<8x1xi32>
    %48 = vector.broadcast %9 : i32 to vector<8x1xi32>
    %49 = arith.select %46, %47, %48 : vector<8x1xi1>, vector<8x1xi32>
    %50 = vector.broadcast %5 : i32 to vector<8x1xi32>
    %51 = arith.select %44, %50, %49 : vector<8x1xi1>, vector<8x1xi32>
    %52 = vector.broadcast %3 : i32 to vector<8x1xi32>
    %53 = arith.select %42, %52, %51 : vector<8x1xi1>, vector<8x1xi32>
    %54 = vector.broadcast %1 : i32 to vector<8x1xi32>
    %55 = arith.select %40, %54, %53 : vector<8x1xi1>, vector<8x1xi32>
    %56 = vector.broadcast %38 : vector<8x1xi32> to vector<8x32xi32>
    %57 = arith.cmpi sge, %17, %56 : vector<8x32xi32>
    %58 = vector.broadcast %55 : vector<8x1xi32> to vector<8x32xi32>
    %59 = arith.cmpi slt, %17, %58 : vector<8x32xi32>
    %60 = arith.andi %57, %59 : vector<8x32xi1>
    %61 = arith.subi %55, %38 : vector<8x1xi32>
    %62 = arith.sitofp %61 : vector<8x1xi32> to vector<8x1xf32>
    %cst_11 = arith.constant 1.000000e+00 : f32
    %63 = vector.broadcast %cst_11 : f32 to vector<8x1xf32>
    %64 = arith.maximumf %62, %63 : vector<8x1xf32>
    %cst_12 = arith.constant 1.000000e+00 : f32
    %65 = vector.broadcast %cst_12 : f32 to vector<8x1xf32>
    %66 = arith.divf %65, %64 : vector<8x1xf32>
    %c1_i32_13 = arith.constant 1 : i32
    %67 = vector.broadcast %c1_i32_13 : i32 to vector<8x1xi32>
    %68 = arith.cmpi eq, %16, %67 : vector<8x1xi32>
    %c3_i32_14 = arith.constant 3 : i32
    %69 = vector.broadcast %c3_i32_14 : i32 to vector<8x1xi32>
    %70 = arith.cmpi eq, %16, %69 : vector<8x1xi32>
    %71 = arith.ori %68, %70 : vector<8x1xi1>
    %c0_15 = arith.constant 0 : index
    %c0_16 = arith.constant 0 : index
    %72 = vector.load %arg4[%c0_15, %c0_16] : memref<8x1xf32, #tpu.memory_space<vmem>>, vector<8x1xf32>
    %73 = vector.broadcast %72 : vector<8x1xf32> to vector<8x32xf32>
    %74 = arith.addf %15, %73 : vector<8x32xf32>
    %75 = vector.shape_cast %71 : vector<8x1xi1> to vector<8x1xi1>
    %76 = vector.broadcast %75 : vector<8x1xi1> to vector<8x32xi1>
    %77 = vector.shape_cast %66 : vector<8x1xf32> to vector<8x1xf32>
    %78 = vector.broadcast %77 : vector<8x1xf32> to vector<8x32xf32>
    %79 = arith.select %76, %78, %74 : vector<8x32xi1>, vector<8x32xf32>
    %cst_17 = arith.constant 0.000000e+00 : f32
    %80 = vector.broadcast %cst_17 : f32 to vector<8x32xf32>
    %81 = arith.select %60, %79, %80 : vector<8x32xi1>, vector<8x32xf32>
    %82 = arith.truncf %81 : vector<8x32xf32> to vector<8x32xbf16>
    %cst_18 = arith.constant dense<0.000000e+00> : vector<8x768xf32>
    %83 = tpu.matmul %82, %13, %cst_18 {dimension_numbers = #tpu.dot_dimension_numbers<[1], [0], [0], [1], [0, 0, 1, 1], [], []>} : vector<8x32xbf16>, vector<32x768xbf16>, vector<8x768xf32> -> vector<8x768xf32>
    %84 = vector.shape_cast %83 : vector<8x768xf32> to vector<1x8x768xf32>
    %cst_19 = arith.constant dense<0.000000e+00> : vector<1xf32>
    %85 = vector.multi_reduction <add>, %84, %cst_19 [1, 2] : vector<1x8x768xf32> to vector<1xf32>
    %86 = vector.shape_cast %85 : vector<1xf32> to vector<1x1x1xf32>
    %87 = vector.extract %86[0, 0, 0] : f32 from vector<1x1x1xf32>
    %cst_20 = arith.constant 2.6041668E-4 : f32
    %88 = arith.mulf %87, %cst_20 : f32
    %89 = arith.mulf %83, %83 : vector<8x768xf32>
    %90 = vector.shape_cast %89 : vector<8x768xf32> to vector<1x8x768xf32>
    %cst_21 = arith.constant dense<0.000000e+00> : vector<1xf32>
    %91 = vector.multi_reduction <add>, %90, %cst_21 [1, 2] : vector<1x8x768xf32> to vector<1xf32>
    %92 = vector.shape_cast %91 : vector<1xf32> to vector<1x1x1xf32>
    %93 = vector.extract %92[0, 0, 0] : f32 from vector<1x1x1xf32>
    %cst_22 = arith.constant 2.6041668E-4 : f32
    %94 = arith.mulf %93, %cst_22 : f32
    %95 = arith.mulf %88, %88 : f32
    %96 = arith.subf %94, %95 : f32
    %cst_23 = arith.constant 0.000000e+00 : f32
    %97 = arith.maximumf %96, %cst_23 : f32
    %cst_24 = arith.constant 9.99999974E-6 : f32
    %98 = arith.addf %97, %cst_24 : f32
    %99 = math.rsqrt %98 : f32
    %c0_25 = arith.constant 0 : index
    %c0_26 = arith.constant 0 : index
    %c0_27 = arith.constant 0 : index
    %100 = vector.load %arg5[%c0_25, %c0_26, %c0_27] : memref<3x8x768xf32, #tpu.memory_space<vmem>>, vector<3x8x768xf32>
    %101 = vector.shape_cast %83 : vector<8x768xf32> to vector<1x8x768xf32>
    %102 = vector.broadcast %101 : vector<1x8x768xf32> to vector<3x8x768xf32>
    %103 = arith.mulf %100, %102 : vector<3x8x768xf32>
    %cst_28 = arith.constant dense<0.000000e+00> : vector<3x8xf32>
    %104 = vector.multi_reduction <add>, %103, %cst_28 [2] : vector<3x8x768xf32> to vector<3x8xf32>
    %cst_29 = arith.constant dense<0.000000e+00> : vector<3xf32>
    %105 = vector.multi_reduction <add>, %104, %cst_29 [1] : vector<3x8xf32> to vector<3xf32>
    %106 = vector.shape_cast %105 : vector<3xf32> to vector<3x1xf32>
    %c0_30 = arith.constant 0 : index
    %c0_31 = arith.constant 0 : index
    %107 = vector.load %arg6[%c0_30, %c0_31] : memref<3x2xf32, #tpu.memory_space<vmem>>, vector<3x1xf32>
    %c0_32 = arith.constant 0 : index
    %c1_33 = arith.constant 1 : index
    %108 = vector.load %arg6[%c0_32, %c1_33] : memref<3x2xf32, #tpu.memory_space<vmem>>, vector<3x1xf32>
    %109 = vector.broadcast %88 : f32 to vector<3x1xf32>
    %110 = arith.mulf %109, %107 : vector<3x1xf32>
    %111 = arith.subf %106, %110 : vector<3x1xf32>
    %112 = vector.broadcast %99 : f32 to vector<3x1xf32>
    %113 = arith.mulf %112, %111 : vector<3x1xf32>
    %114 = arith.addf %113, %108 : vector<3x1xf32>
    %cst_34 = arith.constant dense<0xFF800000> : vector<1xf32>
    %115 = vector.multi_reduction <maximumf>, %114, %cst_34 [0] : vector<3x1xf32> to vector<1xf32>
    %116 = vector.shape_cast %115 : vector<1xf32> to vector<1x1xf32>
    %117 = vector.broadcast %116 : vector<1x1xf32> to vector<3x1xf32>
    %118 = arith.subf %114, %117 : vector<3x1xf32>
    %119 = math.exp %118 : vector<3x1xf32>
    %cst_35 = arith.constant dense<0.000000e+00> : vector<1xf32>
    %120 = vector.multi_reduction <add>, %119, %cst_35 [0] : vector<3x1xf32> to vector<1xf32>
    %121 = vector.shape_cast %120 : vector<1xf32> to vector<1x1xf32>
    %122 = tpu.reciprocal %121 {approx = true} : vector<1x1xf32> -> vector<1x1xf32>
    %123 = vector.broadcast %122 : vector<1x1xf32> to vector<3x1xf32>
    %124 = arith.mulf %119, %123 : vector<3x1xf32>
    %125 = vector.shape_cast %124 : vector<3x1xf32> to vector<1x3x1xf32>
    %c0_36 = arith.constant 0 : index
    %c0_37 = arith.constant 0 : index
    %c0_38 = arith.constant 0 : index
    %126 = vector.load %arg7[%c0_36, %c0_37, %c0_38] : memref<1x3x1xf32, #tpu.memory_space<vmem>>, vector<1x3x1xf32>
    tpu.vector_store %arg7[%c0_36, %c0_37, %c0_38], %125 {strides = array<i32>} : memref<1x3x1xf32, #tpu.memory_space<vmem>>, vector<1x3x1xf32>,
    return
  }
  func.func @transform_0(%arg0: i32, %arg1: memref<4x5xi32, #tpu.memory_space<smem>>) -> (i32, i32, i32) {
    %c0_i32 = arith.constant 0 : i32
    %c0_i32_0 = arith.constant 0 : i32
    %c0_i32_1 = arith.constant 0 : i32
    return %arg0, %c0_i32, %c0_i32_0 : i32, i32, i32
  }
  func.func @transform_1(%arg0: i32, %arg1: memref<4x5xi32, #tpu.memory_space<smem>>) -> (i32, i32) {
    %c0_i32 = arith.constant 0 : i32
    %c0_i32_0 = arith.constant 0 : i32
    %c0_i32_1 = arith.constant 0 : i32
    return %c0_i32, %c0_i32_0 : i32, i32
  }
  func.func @transform_2(%arg0: i32, %arg1: memref<4x5xi32, #tpu.memory_space<smem>>) -> (i32, i32) {
    %c0_i32 = arith.constant 0 : i32
    %c0_i32_0 = arith.constant 0 : i32
    %c0_i32_1 = arith.constant 0 : i32
    return %c0_i32, %c0_i32_0 : i32, i32
  }
  func.func @transform_3(%arg0: i32, %arg1: memref<4x5xi32, #tpu.memory_space<smem>>) -> (i32, i32, i32) {
    %c0_i32 = arith.constant 0 : i32
    %c0_i32_0 = arith.constant 0 : i32
    %c0_i32_1 = arith.constant 0 : i32
    %c0_i32_2 = arith.constant 0 : i32
    return %c0_i32, %c0_i32_0, %c0_i32_1 : i32, i32, i32
  }
  func.func @transform_4(%arg0: i32, %arg1: memref<4x5xi32, #tpu.memory_space<smem>>) -> (i32, i32) {
    %c0_i32 = arith.constant 0 : i32
    %c0_i32_0 = arith.constant 0 : i32
    %c0_i32_1 = arith.constant 0 : i32
    return %c0_i32, %c0_i32_0 : i32, i32
  }
  func.func @transform_5(%arg0: i32, %arg1: memref<4x5xi32, #tpu.memory_space<smem>>) -> (i32, i32, i32) {
    %c0_i32 = arith.constant 0 : i32
    %c0_i32_0 = arith.constant 0 : i32
    %c0_i32_1 = arith.constant 0 : i32
    return %arg0, %c0_i32, %c0_i32_0 : i32, i32, i32
  }
}

</mosaic_0001>

<llo_original>
// kernel: tpu_custom_call.1
$region0: #{tpu_custom_call.1}
  #allocation0 [shape = 'u32[]', space=smem, size = 0x4, offset = 0x4, fixed_abs, tag = 'smem constant byte address 0x4 - core index']
  #allocation1 [shape = 'u32[144,128]{1,0:T(1,128)}', space=vmem, size = 0x12000, scoped, tag = 'internal scratch']
  #allocation2 [shape = 's32[1]{0}', space=sflag, size = 0x4, scoped, tag = 'scoped memory for tpu_custom_call.1']
  #allocation3 [shape = 'u8[2048]{0}', space=smem, size = 0x800, scoped, tag = 'prefetched SMEM operand 0']
  %s0 = inlined_call_operand.vmem [shape: s32[4,5], index: 0, kind: input, shape index: {}]
  %s1 = inlined_call_operand.hbm [shape: bf16[4,32,768], index: 1, kind: input, shape index: {}]
  %s2 = inlined_call_operand.hbm [shape: bf16[8,768], index: 2, kind: input, shape index: {}]
  %s3 = inlined_call_operand.vmem [shape: f32[8,1], index: 3, kind: input, shape index: {}]
  %s4 = inlined_call_operand.hbm [shape: f32[3,8,768], index: 4, kind: input, shape index: {}]
  %s5 = inlined_call_operand.vmem [shape: f32[3,2], index: 5, kind: input, shape index: {}]
  %s6 = inlined_call_operand.vmem [shape: f32[4,3,1], index: 6, kind: output, shape index: {}]
  %s7 = sld [smem:[#allocation0]]
  $region65: #{tpu_custom_call.1} parent=0
    _
  %s9 = ssub.s32 1, %s7
  %s10 = scalar_select 0, %s9, %s7
  %s11 = sshll.u32 %s0, 4
  %s12 = int_to_ptr.vmem [resolvable:$true] %s11
  %14 = dma.vmem_to_smem %s12, 64, [#allocation3], [#allocation2]
  %15 = dma.done [#allocation2], 64
  %16 = sfence
  $region1: #{tpu_custom_call.1} parent=0
    #allocation4 [shape = 'u8[98304]{0}', space=vmem, size = 0x18000, scoped, tag = 'input window, operand 1']
    #allocation5 [shape = 's32[2]{0}', space=sflag, size = 0x8, scoped, tag = 'scoped memory for tpu_custom_call.1']
    #allocation6 [shape = 'u8[12288]{0}', space=vmem, size = 0x3000, scoped, tag = 'input window, operand 2, single buffered']
    #allocation7 [shape = 's32[1]{0}', space=sflag, size = 0x4, scoped, tag = 'scoped memory for tpu_custom_call.1']
    #allocation8 [shape = 'u8[73728]{0}', space=vmem, size = 0x12000, scoped, tag = 'input window, operand 4, single buffered']
    %17 = vsyncpa [#allocation5], 0
    %s18 = scalar_lea.sflag [#allocation5], 1
    %19 = vsyncpa %s18, 0
    %20 = vsyncpa [#allocation7], 0
    loop: start=0, step=1, limit=6
    $region2: #{tpu_custom_call.1} parent=1 // loop_pre_header
      _
    $region3: #{tpu_custom_call.1} parent=1 // loop_header
      %s22 = sphi 0, %s26
      %p23 = scmp.ge.s32.totalorder %s22, 6
      %s32 = sphi 0, %s34
      %s35 = sphi 0, %s32
      %s36 = sphi 0, %s35
      %s52 = sphi 0, %s36
      %s56 = sphi 0, %s56
      %s58 = sphi 0, %s56
      %s59 = sphi 0, %s58
      %s73 = sphi 0, %s59
      %s77 = sphi 0, %s77
      %s79 = sphi 0, %s77
      %s80 = sphi 0, %s79
      %s94 = sphi 0, %s80
      %s98 = sphi 0, %s98
      %s100 = sphi 0, %s98
      %s101 = sphi 0, %s100
      %s115 = sphi 0, %s101
      %s119 = sphi 0, %s119
      %s121 = sphi 0, %s119
      %s122 = sphi 0, %s121
      %s136 = sphi 0, %s122
      %s142 = sphi 0, %s144
      %s145 = sphi 0, %s142
      %s146 = sphi 0, %s145
      %s162 = sphi 0, %s146
    $region4: #{tpu_custom_call.1} parent=1 // loop_header_branch
      %25 = sbr.rel (%p23) target = $region8
    $region5: #{tpu_custom_call.1} parent=1 // loop_body
      %s27 = ssub.s32 %s22, 1
      %s28 = ssub.s32 %s22, 2
      %s29 = sadd.s32 %s22, 1
      %s30 = ssub.s32 %s22, %s29
      %p31 = scmp.eq.s32.totalorder %s30, 0
      %s33 = sadd.s32 %s32, 1
      %s34 = scalar_select %p31, %s32, %s33
      %p37 = pneg %p31
      %p38 = scmp.eq.s32.totalorder %s22, 3
      %p39 = por %p37, %p38
      %p40 = scmp.ne.s32.totalorder %s32, %s35
      %p41 = scmp.eq.s32.totalorder %s22, 0
      %p42 = por %p40, %p41
      %p43 = scmp.ne.s32.totalorder %s32, %s35
      %p44 = scmp.eq.s32.totalorder %s27, 3
      %p45 = por %p43, %p44
      %p46 = scmp.ne.s32.totalorder %s35, %s36
      %p47 = scmp.eq.s32.totalorder %s27, 0
      %p48 = por %p46, %p47
      %p49 = scmp.ne.s32.totalorder %s35, %s36
      %p50 = scmp.eq.s32.totalorder %s28, 3
      %p51 = por %p49, %p50
      %p53 = scmp.ne.s32.totalorder %s36, %s52
      %p54 = scmp.eq.s32.totalorder %s28, 0
      %p55 = por %p53, %p54
      %s57 = sadd.s32 %s56, 1
      %p60 = scmp.eq.s32.totalorder %s22, 3
      %p61 = scmp.ne.s32.totalorder %s56, %s58
      %p62 = scmp.eq.s32.totalorder %s22, 0
      %p63 = por %p61, %p62
      %p64 = scmp.ne.s32.totalorder %s56, %s58
      %p65 = scmp.eq.s32.totalorder %s27, 3
      %p66 = por %p64, %p65
      %p67 = scmp.ne.s32.totalorder %s58, %s59
      %p68 = scmp.eq.s32.totalorder %s27, 0
      %p69 = por %p67, %p68
      %p70 = scmp.ne.s32.totalorder %s58, %s59
      %p71 = scmp.eq.s32.totalorder %s28, 3
      %p72 = por %p70, %p71
      %p74 = scmp.ne.s32.totalorder %s59, %s73
      %p75 = scmp.eq.s32.totalorder %s28, 0
      %p76 = por %p74, %p75
      %s78 = sadd.s32 %s77, 1
      %p81 = scmp.eq.s32.totalorder %s22, 3
      %p82 = scmp.ne.s32.totalorder %s77, %s79
      %p83 = scmp.eq.s32.totalorder %s22, 0
      %p84 = por %p82, %p83
      %p85 = scmp.ne.s32.totalorder %s77, %s79
      %p86 = scmp.eq.s32.totalorder %s27, 3
      %p87 = por %p85, %p86
      %p88 = scmp.ne.s32.totalorder %s79, %s80
      %p89 = scmp.eq.s32.totalorder %s27, 0
      %p90 = por %p88, %p89
      %p91 = scmp.ne.s32.totalorder %s79, %s80
      %p92 = scmp.eq.s32.totalorder %s28, 3
      %p93 = por %p91, %p92
      %p95 = scmp.ne.s32.totalorder %s80, %s94
      %p96 = scmp.eq.s32.totalorder %s28, 0
      %p97 = por %p95, %p96
      %s99 = sadd.s32 %s98, 1
      %p102 = scmp.eq.s32.totalorder %s22, 3
      %p103 = scmp.ne.s32.totalorder %s98, %s100
      %p104 = scmp.eq.s32.totalorder %s22, 0
      %p105 = por %p103, %p104
      %p106 = scmp.ne.s32.totalorder %s98, %s100
      %p107 = scmp.eq.s32.totalorder %s27, 3
      %p108 = por %p106, %p107
      %p109 = scmp.ne.s32.totalorder %s100, %s101
      %p110 = scmp.eq.s32.totalorder %s27, 0
      %p111 = por %p109, %p110
      %p112 = scmp.ne.s32.totalorder %s100, %s101
      %p113 = scmp.eq.s32.totalorder %s28, 3
      %p114 = por %p112, %p113
      %p116 = scmp.ne.s32.totalorder %s101, %s115
      %p117 = scmp.eq.s32.totalorder %s28, 0
      %p118 = por %p116, %p117
      %s120 = sadd.s32 %s119, 1
      %p123 = scmp.eq.s32.totalorder %s22, 3
      %p124 = scmp.ne.s32.totalorder %s119, %s121
      %p125 = scmp.eq.s32.totalorder %s22, 0
      %p126 = por %p124, %p125
      %p127 = scmp.ne.s32.totalorder %s119, %s121
      %p128 = scmp.eq.s32.totalorder %s27, 3
      %p129 = por %p127, %p128
      %p130 = scmp.ne.s32.totalorder %s121, %s122
      %p131 = scmp.eq.s32.totalorder %s27, 0
      %p132 = por %p130, %p131
      %p133 = scmp.ne.s32.totalorder %s121, %s122
      %p134 = scmp.eq.s32.totalorder %s28, 3
      %p135 = por %p133, %p134
      %p137 = scmp.ne.s32.totalorder %s122, %s136
      %p138 = scmp.eq.s32.totalorder %s28, 0
      %p139 = por %p137, %p138
      %s140 = ssub.s32 %s22, %s29
      %p141 = scmp.eq.s32.totalorder %s140, 0
      %s143 = sadd.s32 %s142, 1
      %s144 = scalar_select %p141, %s142, %s143
      %p147 = pneg %p141
      %p148 = scmp.eq.s32.totalorder %s22, 3
      %p149 = por %p147, %p148
      %p150 = scmp.ne.s32.totalorder %s142, %s145
      %p151 = scmp.eq.s32.totalorder %s22, 0
      %p152 = por %p150, %p151
      %p153 = scmp.ne.s32.totalorder %s142, %s145
      %p154 = scmp.eq.s32.totalorder %s27, 3
      %p155 = por %p153, %p154
      %p156 = scmp.ne.s32.totalorder %s145, %s146
      %p157 = scmp.eq.s32.totalorder %s27, 0
      %p158 = por %p156, %p157
      %p159 = scmp.ne.s32.totalorder %s145, %s146
      %p160 = scmp.eq.s32.totalorder %s28, 3
      %p161 = por %p159, %p160
      %p163 = scmp.ne.s32.totalorder %s146, %s162
      %p164 = scmp.eq.s32.totalorder %s28, 0
      %p165 = por %p163, %p164
      %p166 = scmp.le.s32.totalorder 1, %s22
      %p167 = scmp.lt.s32.totalorder %s22, 5
      %p168 = pnand %p166, %p167
      %p169 = pneg %p168
      // Predicated region
      $region9: #{tpu_custom_call.1} parent=5 // pred_check
        _
      $region10: #{tpu_custom_call.1} parent=5 // pred_check_branch
        %171 = sbr.rel (%p168) target = $region12
      $region11: #{tpu_custom_call.1} parent=5 // pred_region
        %s172 = ssub.s32 %s22, 1
        // Predicated region
        $region13: #{tpu_custom_call.1} parent=11 // pred_check
          %p173 = pneg %p69
        $region14: #{tpu_custom_call.1} parent=11 // pred_check_branch
          %175 = sbr.rel (%p173) target = $region16
        $region15: #{tpu_custom_call.1} parent=11 // pred_region
          %s177 = ssub.s32 384, 384
          %178 = vsyncadd [#allocation7], %s177
          %s180 = sshll.u32 [#allocation6], 4
          %s181 = int_to_ptr.vmem [resolvable:$true] %s180
          %183 = dma.hbm_to_vmem [thread:$0]  %s2, 384, %s181, [#allocation7]
        $region16: #{tpu_custom_call.1} parent=11 // pred_fallthru
          _
        // Predicated region
        $region17: #{tpu_custom_call.1} parent=11 // pred_check
          %p184 = pneg %p90
        $region18: #{tpu_custom_call.1} parent=11 // pred_check_branch
          %186 = sbr.rel (%p184) target = $region20
        $region19: #{tpu_custom_call.1} parent=11 // pred_region
          _
        $region20: #{tpu_custom_call.1} parent=11 // pred_fallthru
          _
        // Predicated region
        $region21: #{tpu_custom_call.1} parent=11 // pred_check
          %p187 = pneg %p111
        $region22: #{tpu_custom_call.1} parent=11 // pred_check_branch
          %189 = sbr.rel (%p187) target = $region24
        $region23: #{tpu_custom_call.1} parent=11 // pred_region
          %s191 = ssub.s32 2304, 2304
          %192 = vsyncadd [#allocation7], %s191
          %s193 = sshll.u32 [#allocation8], 4
          %s194 = int_to_ptr.vmem [resolvable:$true] %s193
          %199 = dma.hbm_to_vmem [thread:$0]  %s4, 2304, %s194, [#allocation7], 768, 768, 48
        $region24: #{tpu_custom_call.1} parent=11 // pred_fallthru
          _
        // Predicated region
        $region25: #{tpu_custom_call.1} parent=11 // pred_check
          %p200 = pneg %p132
        $region26: #{tpu_custom_call.1} parent=11 // pred_check_branch
          %202 = sbr.rel (%p200) target = $region28
        $region27: #{tpu_custom_call.1} parent=11 // pred_region
          _
        $region28: #{tpu_custom_call.1} parent=11 // pred_fallthru
          _
      $region12: #{tpu_custom_call.1} parent=5 // pred_fallthru
        _
      %p203 = scmp.lt.s32.totalorder %s22, 4
      // Predicated region
      $region29: #{tpu_custom_call.1} parent=5 // pred_check
        %p204 = pneg %p203
      $region30: #{tpu_custom_call.1} parent=5 // pred_check_branch
        %206 = sbr.rel (%p204) target = $region32
      $region31: #{tpu_custom_call.1} parent=5 // pred_region
        // Predicated region
        $region33: #{tpu_custom_call.1} parent=31 // pred_check
          %p207 = pneg %p42
        $region34: #{tpu_custom_call.1} parent=31 // pred_check_branch
          %209 = sbr.rel (%p207) target = $region36
        $region35: #{tpu_custom_call.1} parent=31 // pred_region
          %s210 = sand.u32 %s32, 1
          %s211 = scalar_lea.sflag [#allocation5], %s210
          %s212 = sand.u32 %s32, 1
          %s213 = smul.addr %s212, 96
          %s214 = scalar_lea.vmem [#allocation4], %s213
          %s216 = ssub.s32 1536, 1536
          %217 = vsyncadd %s211, %s216
          %s218 = smul.addr %s22, 24
          %s219 = smul.addr %s218, 64
          %s220 = scalar_lea.hbm %s1, %s219
          %s221 = sshll.u32 %s214, 4
          %s222 = int_to_ptr.vmem [resolvable:$true] %s221
          %227 = dma.hbm_to_vmem [thread:$0]  %s220, 1536, %s222, %s211, 384, 384, 24
        $region36: #{tpu_custom_call.1} parent=31 // pred_fallthru
          _
      $region32: #{tpu_custom_call.1} parent=5 // pred_fallthru
        _
      %p228 = scmp.le.s32.totalorder 1, %s22
      %p229 = scmp.lt.s32.totalorder %s22, 5
      %p230 = pnand %p228, %p229
      %p231 = pneg %p230
      // Predicated region
      $region37: #{tpu_custom_call.1} parent=5 // pred_check
        _
      $region38: #{tpu_custom_call.1} parent=5 // pred_check_branch
        %233 = sbr.rel (%p230) target = $region40
      $region39: #{tpu_custom_call.1} parent=5 // pred_region
        %s234 = ssub.s32 %s22, 1
        %s235 = sand.u32 %s35, 1
        %s236 = scalar_lea.sflag [#allocation5], %s235
        %s237 = sand.u32 %s35, 1
        %s238 = smul.addr %s237, 96
        %s239 = scalar_lea.vmem [#allocation4], %s238
        // Predicated region
        $region41: #{tpu_custom_call.1} parent=39 // pred_check
          %p240 = pneg %p48
        $region42: #{tpu_custom_call.1} parent=39 // pred_check_branch
          %242 = sbr.rel (%p240) target = $region44
        $region43: #{tpu_custom_call.1} parent=39 // pred_region
          %243 = dma.done %s236, 1536
        $region44: #{tpu_custom_call.1} parent=39 // pred_fallthru
          _
        // Predicated region
        $region45: #{tpu_custom_call.1} parent=39 // pred_check
          %p244 = pneg %p69
        $region46: #{tpu_custom_call.1} parent=39 // pred_check_branch
          %246 = sbr.rel (%p244) target = $region48
        $region47: #{tpu_custom_call.1} parent=39 // pred_region
          %247 = dma.done [#allocation7], 384
        $region48: #{tpu_custom_call.1} parent=39 // pred_fallthru
          _
        // Predicated region
        $region49: #{tpu_custom_call.1} parent=39 // pred_check
          %p248 = pneg %p111
        $region50: #{tpu_custom_call.1} parent=39 // pred_check_branch
          %250 = sbr.rel (%p248) target = $region52
        $region51: #{tpu_custom_call.1} parent=39 // pred_region
          %251 = dma.done [#allocation7], 2304
        $region52: #{tpu_custom_call.1} parent=39 // pred_fallthru
          _
        %s252 = sand.u32 %s35, 1
        %s253 = scalar_lea.sflag [#allocation5], %s252
        %s254 = sand.u32 %s35, 1
        %s255 = smul.addr %s254, 96
        %s256 = scalar_lea.vmem [#allocation4], %s255
        %p257 = pneg %p48
        %p258 = pneg %p45
        %p259 = pneg %p69
        %p260 = pneg %p66
        %p261 = pneg %p90
        %p262 = pneg %p87
        %p263 = pneg %p111
        %p264 = pneg %p108
        %p265 = pneg %p132
        %p266 = pneg %p129
        %p267 = pneg %p158
        %p268 = pneg %p155
        %p269 = scmp.lt.s32.totalorder %s27, 3
        %s270 = scalar_select %p269, %s27, 3
        %s271 = smul.addr %s270, 4
        %s272 = scalar_lea.vmem %s6, %s271
        %p273 = scmp.lt.s32.totalorder %s27, 3
        %s274 = scalar_select %p273, %s27, 3
        %s275 = smul.addr %s274, 4
        %s276 = scalar_lea.vmem %s6, %s275
        %s278 = smul.u32 %s27, 128
        %s279 = sld [smem:[#allocation3 + %s278]]
        %s280 = sadd.s32 %s278, 1
        %s281 = sld [smem:[#allocation3 + %s280]]
        %s282 = sadd.s32 %s278, 2
        %s283 = sld [smem:[#allocation3 + %s282]]
        %s284 = sadd.s32 %s278, 3
        %s285 = sld [smem:[#allocation3 + %s284]]
        %s286 = sadd.s32 %s278, 4
        %s287 = sld [smem:[#allocation3 + %s286]]
        %v288 = vld [vmem:[%s239] sm:$0xff]
        %v289 = vld [vmem:[%s239 + $0x8] sm:$0xff]
        %v290 = vld [vmem:[%s239 + $0x10] sm:$0xff]
        %v291 = vld [vmem:[%s239 + $0x18] sm:$0xff]
        %v292 = vld [vmem:[%s239 + $0x20] sm:$0xff]
        %v293 = vld [vmem:[%s239 + $0x28] sm:$0xff]
        %v294 = vld [vmem:[%s239 + $0x30] sm:$0xff]
        %v295 = vld [vmem:[%s239 + $0x38] sm:$0xff]
        %v296 = vld [vmem:[%s239 + $0x40] sm:$0xff]
        %v297 = vld [vmem:[%s239 + $0x48] sm:$0xff]
        %v298 = vld [vmem:[%s239 + $0x50] sm:$0xff]
        %v299 = vld [vmem:[%s239 + $0x58] sm:$0xff]
        %v300 = vmax.bf16 %v288, 0
        %v301 = vmax.bf16 %v289, 0
        %v302 = vmax.bf16 %v290, 0
        %v303 = vmax.bf16 %v291, 0
        %v304 = vmax.bf16 %v292, 0
        %v305 = vmax.bf16 %v293, 0
        %v306 = vmax.bf16 %v294, 0
        %v307 = vmax.bf16 %v295, 0
        %v308 = vmax.bf16 %v296, 0
        %v309 = vmax.bf16 %v297, 0
        %v310 = vmax.bf16 %v298, 0
        %v311 = vmax.bf16 %v299, 0
        %v312 = vld [vmem:[#allocation6] sm:$0xff]
        %v313 = vld [vmem:[#allocation6 + $0x8] sm:$0xff]
        %v314 = vld [vmem:[#allocation6 + $0x10] sm:$0xff]
        %v315 = vlaneseq
        %v316 = vshrl.u32 %v315, 7
        %v317 = vlaneseq
        %v318 = vand.u32 %v317, 127
        %vm319 = vcmp.eq.s32.totalorder %v316, 0
        %vm320 = vcmp.eq.s32.totalorder %v316, 1
        %vm321 = vcmp.eq.s32.totalorder %v316, 2
        %vm322 = vcmp.eq.s32.totalorder %v316, 3
        %vm323 = vcmp.eq.s32.totalorder %v316, 4
        %v324 = vstv %s285
        %v325 = vstv %s287
        %v326 = vsel %vm323, %v324, %v325
        %v327 = vstv %s283
        %v328 = vsel %vm322, %v327, %v326
        %v329 = vstv %s281
        %v330 = vsel %vm321, %v329, %v328
        %v331 = vstv %s279
        %v332 = vsel %vm320, %v331, %v330
        %v333 = vsel %vm319, 0, %v332
        %v334 = vsel %vm322, %v324, %v325
        %v335 = vsel %vm321, %v327, %v334
        %v336 = vsel %vm320, %v329, %v335
        %v337 = vsel %vm319, %v331, %v336
        %vm338 = vcmp.ge.s32.totalorder %v318, %v333
        %vm339 = vcmp.lt.s32.totalorder %v318, %v337
        %vm340 = vmand %vm338, %vm339
        %v341 = vsub.s32 %v337, %v333
        %v342 = vcvt.s32.f32 %v341
        %v343 = vmax.f32 %v342, 1.0
        %v344 = vrcp.pop %v343
        %v345 = vmul.f32 1.0, %v344
        %vm346 = vmor %vm320, %vm322
        %v347 = vld [vmem:[%s3] sm:$0xff]
        %349 = vset.pattern.permute.xlu0 0
        %350 = vperm.xlu0 %349, %v347
        %v351 = vpop.permute.xlu0 %350
        %v356 = vunpack.c.l.b16 %v312
        %v357 = vunpack.c.h.b16 %v312
        %v358 = vunpack.c.l.b16 %v313
        %v359 = vunpack.c.h.b16 %v313
        %v360 = vunpack.c.l.b16 %v314
        %v361 = vunpack.c.h.b16 %v314
        %v362 = vpack.c.b16 %v356, %v356
        %v363 = vpack.c.b16 %v357, %v357
        %v364 = vpack.c.b16 %v358, %v358
        %v365 = vpack.c.b16 %v359, %v359
        %v366 = vpack.c.b16 %v360, %v360
        %v367 = vpack.c.b16 %v361, %v361
        %v386 = vunpack.c.l.b16 %v300
        %v387 = vunpack.c.h.b16 %v300
        %v388 = vunpack.c.l.b16 %v301
        %v389 = vunpack.c.h.b16 %v301
        %v390 = vunpack.c.l.b16 %v302
        %v391 = vunpack.c.h.b16 %v302
        %v392 = vunpack.c.l.b16 %v303
        %v393 = vunpack.c.h.b16 %v303
        %v394 = vunpack.c.l.b16 %v304
        %v395 = vunpack.c.h.b16 %v304
        %v396 = vunpack.c.l.b16 %v305
        %v397 = vunpack.c.h.b16 %v305
        %v398 = vunpack.c.l.b16 %v306
        %v399 = vunpack.c.h.b16 %v306
        %v400 = vunpack.c.l.b16 %v307
        %v401 = vunpack.c.h.b16 %v307
        %v402 = vunpack.c.l.b16 %v308
        %v403 = vunpack.c.h.b16 %v308
        %v404 = vunpack.c.l.b16 %v309
        %v405 = vunpack.c.h.b16 %v309
        %v406 = vunpack.c.l.b16 %v310
        %v407 = vunpack.c.h.b16 %v310
        %v408 = vunpack.c.l.b16 %v311
        %v409 = vunpack.c.h.b16 %v311
        %v410 = vpack.c.b16 %v392, %v386
        %v411 = vpack.c.b16 %v393, %v387
        %v412 = vpack.c.b16 %v394, %v388
        %v413 = vpack.c.b16 %v395, %v389
        %v414 = vpack.c.b16 %v396, %v390
        %v415 = vpack.c.b16 %v397, %v391
        %v416 = vpack.c.b16 %v404, %v398
        %v417 = vpack.c.b16 %v405, %v399
        %v418 = vpack.c.b16 %v406, %v400
        %v419 = vpack.c.b16 %v407, %v401
        %v420 = vpack.c.b16 %v408, %v402
        %v421 = vpack.c.b16 %v409, %v403
        %434 = vmatprep.subr.bf16.mxu0 %v411
        %435 = vmatpush1.bf16.xpose.msra.mxu0 %v410
        %436 = vmatprep.subr.bf16.mxu0 %v417
        %437 = vmatpush1.bf16.xpose.msra.mxu0 %v416
        %438 = vmatprep.subr.bf16.mxu0 0
        %439 = vmatpush1.bf16.xpose.msra.mxu0 0
        %440 = vmatprep.subr.bf16.mxu0 0
        %441 = vmatpush1.bf16.xpose.msra.mxu0 0
        %442 = vmatprep.subr.bf16.mxu0 0
        %443 = vmatpush1.bf16.xpose.msra.mxu0 0
        %444 = vmatprep.subr.bf16.mxu0 0
        %445 = vmatpush1.bf16.xpose.msra.mxu0 0
        %446 = vmatprep.subr.bf16.mxu0 0
        %447 = vmatpush1.bf16.xpose.msra.mxu0 0
        %448 = vmatprep.subr.bf16.mxu0 0
        %449 = vmatpush1.bf16.xpose.msra.mxu0 0
        %450 = vmatprep.subr.bf16.mxu0 0
        %451 = vmatpush1.bf16.xpose.msra.mxu0 0
        %452 = vmatprep.subr.bf16.mxu0 0
        %453 = vmatpush1.bf16.xpose.msra.mxu0 0
        %454 = vmatprep.subr.bf16.mxu0 0
        %455 = vmatpush1.bf16.xpose.msra.mxu0 0
        %456 = vmatprep.subr.bf16.mxu0 0
        %457 = vmatpush1.bf16.xpose.msra.mxu0 0
        %458 = vmatprep.subr.bf16.mxu0 0
        %459 = vmatpush1.bf16.xpose.msra.mxu0 0
        %460 = vmatprep.subr.bf16.mxu0 0
        %461 = vmatpush1.bf16.xpose.msra.mxu0 0
        %462 = vmatprep.subr.bf16.mxu0 0
        %463 = vmatpush1.bf16.xpose.msra.mxu0 0
        %464 = vmatprep.subr.bf16.mxu0 0
        %465 = vmatpush1.bf16.xpose.msra.mxu0 0
        %466 = vmatprep.mubr.bf16.mxu0 %v363
        %467 = vmatmul.mubr.bf16.gmra.mrb[0].mxu0 %v362
        %v468 = vpop.f32.mrb[0].mxu0
        %v469 = vadd.f32 %v351, %v468
        %v470 = vpop.f32.mrb[0].mxu0
        %v471 = vpop.f32.mrb[0].mxu0
        %v472 = vpop.f32.mrb[0].mxu0
        %473 = vdwg.mxu0
        %474 = vmatprep.subr.bf16.mxu0 %v413
        %475 = vmatpush1.bf16.xpose.msra.mxu0 %v412
        %476 = vmatprep.subr.bf16.mxu0 %v419
        %477 = vmatpush1.bf16.xpose.msra.mxu0 %v418
        %478 = vmatprep.subr.bf16.mxu0 0
        %479 = vmatpush1.bf16.xpose.msra.mxu0 0
        %480 = vmatprep.subr.bf16.mxu0 0
        %481 = vmatpush1.bf16.xpose.msra.mxu0 0
        %482 = vmatprep.subr.bf16.mxu0 0
        %483 = vmatpush1.bf16.xpose.msra.mxu0 0
        %484 = vmatprep.subr.bf16.mxu0 0
        %485 = vmatpush1.bf16.xpose.msra.mxu0 0
        %486 = vmatprep.subr.bf16.mxu0 0
        %487 = vmatpush1.bf16.xpose.msra.mxu0 0
        %488 = vmatprep.subr.bf16.mxu0 0
        %489 = vmatpush1.bf16.xpose.msra.mxu0 0
        %490 = vmatprep.subr.bf16.mxu0 0
        %491 = vmatpush1.bf16.xpose.msra.mxu0 0
        %492 = vmatprep.subr.bf16.mxu0 0
        %493 = vmatpush1.bf16.xpose.msra.mxu0 0
        %494 = vmatprep.subr.bf16.mxu0 0
        %495 = vmatpush1.bf16.xpose.msra.mxu0 0
        %496 = vmatprep.subr.bf16.mxu0 0
        %497 = vmatpush1.bf16.xpose.msra.mxu0 0
        %498 = vmatprep.subr.bf16.mxu0 0
        %499 = vmatpush1.bf16.xpose.msra.mxu0 0
        %500 = vmatprep.subr.bf16.mxu0 0
        %501 = vmatpush1.bf16.xpose.msra.mxu0 0
        %502 = vmatprep.subr.bf16.mxu0 0
        %503 = vmatpush1.bf16.xpose.msra.mxu0 0
        %504 = vmatprep.subr.bf16.mxu0 0
        %505 = vmatpush1.bf16.xpose.msra.mxu0 0
        %506 = vmatprep.mubr.bf16.mxu0 %v365
        %507 = vmatmul.mubr.bf16.gmra.mrb[0].mxu0 %v364
        %v508 = vpop.f32.mrb[0].mxu0
        %v509 = vadd.f32 %v469, %v508
        %v510 = vpop.f32.mrb[0].mxu0
        %v511 = vpop.f32.mrb[0].mxu0
        %v512 = vpop.f32.mrb[0].mxu0
        %513 = vdwg.mxu0
        %514 = vmatprep.subr.bf16.mxu0 %v415
        %515 = vmatpush1.bf16.xpose.msra.mxu0 %v414
        %516 = vmatprep.subr.bf16.mxu0 %v421
        %517 = vmatpush1.bf16.xpose.msra.mxu0 %v420
        %518 = vmatprep.subr.bf16.mxu0 0
        %519 = vmatpush1.bf16.xpose.msra.mxu0 0
        %520 = vmatprep.subr.bf16.mxu0 0
        %521 = vmatpush1.bf16.xpose.msra.mxu0 0
        %522 = vmatprep.subr.bf16.mxu0 0
        %523 = vmatpush1.bf16.xpose.msra.mxu0 0
        %524 = vmatprep.subr.bf16.mxu0 0
        %525 = vmatpush1.bf16.xpose.msra.mxu0 0
        %526 = vmatprep.subr.bf16.mxu0 0
        %527 = vmatpush1.bf16.xpose.msra.mxu0 0
        %528 = vmatprep.subr.bf16.mxu0 0
        %529 = vmatpush1.bf16.xpose.msra.mxu0 0
        %530 = vmatprep.subr.bf16.mxu0 0
        %531 = vmatpush1.bf16.xpose.msra.mxu0 0
        %532 = vmatprep.subr.bf16.mxu0 0
        %533 = vmatpush1.bf16.xpose.msra.mxu0 0
        %534 = vmatprep.subr.bf16.mxu0 0
        %535 = vmatpush1.bf16.xpose.msra.mxu0 0
        %536 = vmatprep.subr.bf16.mxu0 0
        %537 = vmatpush1.bf16.xpose.msra.mxu0 0
        %538 = vmatprep.subr.bf16.mxu0 0
        %539 = vmatpush1.bf16.xpose.msra.mxu0 0
        %540 = vmatprep.subr.bf16.mxu0 0
        %541 = vmatpush1.bf16.xpose.msra.mxu0 0
        %542 = vmatprep.subr.bf16.mxu0 0
        %543 = vmatpush1.bf16.xpose.msra.mxu0 0
        %544 = vmatprep.subr.bf16.mxu0 0
        %545 = vmatpush1.bf16.xpose.msra.mxu0 0
        %546 = vmatprep.mubr.bf16.mxu0 %v367
        %547 = vmatmul.mubr.bf16.gmra.mrb[0].mxu0 %v366
        %v548 = vpop.f32.mrb[0].mxu0
        %v549 = vadd.f32 %v509, %v548
        %v550 = vpop.f32.mrb[0].mxu0
        %v551 = vpop.f32.mrb[0].mxu0
        %v552 = vpop.f32.mrb[0].mxu0
        %553 = vdwg.mxu0
        %v554 = vsel %vm346, 1, 0
        %vm555 = vcmp.eq.s32.totalorder %v554, 1
        %v556 = vsel %vm555, %v345, %v549
        %v557 = vsel %vm340, %v556, 0.0
        %v558 = vpack.c.bf16 %v557, %v557
        %vm559 = vcmask 261120
        %v561 = vsel %vm559, %v558, 0
        %563 = vmatprep.subr.bf16.mxu0 %v411
        %564 = vmatpush1.bf16.msra.mxu0 %v410
        %565 = vmatprep.subr.bf16.mxu0 %v417
        %566 = vmatpush1.bf16.msra.mxu0 %v416
        %567 = vmatprep.subr.bf16.mxu0 0
        %568 = vmatpush1.bf16.msra.mxu0 0
        %569 = vmatprep.subr.bf16.mxu0 0
        %570 = vmatpush1.bf16.msra.mxu0 0
        %571 = vmatprep.subr.bf16.mxu0 0
        %572 = vmatpush1.bf16.msra.mxu0 0
        %573 = vmatprep.subr.bf16.mxu0 0
        %574 = vmatpush1.bf16.msra.mxu0 0
        %575 = vmatprep.subr.bf16.mxu0 0
        %576 = vmatpush1.bf16.msra.mxu0 0
        %577 = vmatprep.subr.bf16.mxu0 0
        %578 = vmatpush1.bf16.msra.mxu0 0
        %579 = vmatprep.subr.bf16.mxu0 0
        %580 = vmatpush1.bf16.msra.mxu0 0
        %581 = vmatprep.subr.bf16.mxu0 0
        %582 = vmatpush1.bf16.msra.mxu0 0
        %583 = vmatprep.subr.bf16.mxu0 0
        %584 = vmatpush1.bf16.msra.mxu0 0
        %585 = vmatprep.subr.bf16.mxu0 0
        %586 = vmatpush1.bf16.msra.mxu0 0
        %587 = vmatprep.subr.bf16.mxu0 0
        %588 = vmatpush1.bf16.msra.mxu0 0
        %589 = vmatprep.subr.bf16.mxu0 0
        %590 = vmatpush1.bf16.msra.mxu0 0
        %591 = vmatprep.subr.bf16.mxu0 0
        %592 = vmatpush1.bf16.msra.mxu0 0
        %593 = vmatprep.subr.bf16.mxu0 0
        %594 = vmatpush1.bf16.msra.mxu0 0
        %595 = vmatprep.mubr.bf16.mxu0 0
        %596 = vmatmul.mubr.bf16.gmra.mrb[0].mxu0 %v561
        %v597 = vpop.f32.mrb[0].mxu0
        %v598 = vadd.f32 0.0, %v597
        %v599 = vpop.f32.mrb[0].mxu0
        %v600 = vadd.f32 0.0, %v599
        %v601 = vpop.f32.mrb[0].mxu0
        %v602 = vpop.f32.mrb[0].mxu0
        %603 = vdwg.mxu0
        %604 = vmatprep.subr.bf16.mxu0 %v413
        %605 = vmatpush1.bf16.msra.mxu0 %v412
        %606 = vmatprep.subr.bf16.mxu0 %v419
        %607 = vmatpush1.bf16.msra.mxu0 %v418
        %608 = vmatprep.subr.bf16.mxu0 0
        %609 = vmatpush1.bf16.msra.mxu0 0
        %610 = vmatprep.subr.bf16.mxu0 0
        %611 = vmatpush1.bf16.msra.mxu0 0
        %612 = vmatprep.subr.bf16.mxu0 0
        %613 = vmatpush1.bf16.msra.mxu0 0
        %614 = vmatprep.subr.bf16.mxu0 0
        %615 = vmatpush1.bf16.msra.mxu0 0
        %616 = vmatprep.subr.bf16.mxu0 0
        %617 = vmatpush1.bf16.msra.mxu0 0
        %618 = vmatprep.subr.bf16.mxu0 0
        %619 = vmatpush1.bf16.msra.mxu0 0
        %620 = vmatprep.subr.bf16.mxu0 0
        %621 = vmatpush1.bf16.msra.mxu0 0
        %622 = vmatprep.subr.bf16.mxu0 0
        %623 = vmatpush1.bf16.msra.mxu0 0
        %624 = vmatprep.subr.bf16.mxu0 0
        %625 = vmatpush1.bf16.msra.mxu0 0
        %626 = vmatprep.subr.bf16.mxu0 0
        %627 = vmatpush1.bf16.msra.mxu0 0
        %628 = vmatprep.subr.bf16.mxu0 0
        %629 = vmatpush1.bf16.msra.mxu0 0
        %630 = vmatprep.subr.bf16.mxu0 0
        %631 = vmatpush1.bf16.msra.mxu0 0
        %632 = vmatprep.subr.bf16.mxu0 0
        %633 = vmatpush1.bf16.msra.mxu0 0
        %634 = vmatprep.subr.bf16.mxu0 0
        %635 = vmatpush1.bf16.msra.mxu0 0
        %636 = vmatprep.mubr.bf16.mxu0 0
        %637 = vmatmul.mubr.bf16.gmra.mrb[0].mxu0 %v561
        %v638 = vpop.f32.mrb[0].mxu0
        %v639 = vadd.f32 0.0, %v638
        %v640 = vpop.f32.mrb[0].mxu0
        %v641 = vadd.f32 0.0, %v640
        %v642 = vpop.f32.mrb[0].mxu0
        %v643 = vpop.f32.mrb[0].mxu0
        %644 = vdwg.mxu0
        %645 = vmatprep.subr.bf16.mxu0 %v415
        %646 = vmatpush1.bf16.msra.mxu0 %v414
        %647 = vmatprep.subr.bf16.mxu0 %v421
        %648 = vmatpush1.bf16.msra.mxu0 %v420
        %649 = vmatprep.subr.bf16.mxu0 0
        %650 = vmatpush1.bf16.msra.mxu0 0
        %651 = vmatprep.subr.bf16.mxu0 0
        %652 = vmatpush1.bf16.msra.mxu0 0
        %653 = vmatprep.subr.bf16.mxu0 0
        %654 = vmatpush1.bf16.msra.mxu0 0
        %655 = vmatprep.subr.bf16.mxu0 0
        %656 = vmatpush1.bf16.msra.mxu0 0
        %657 = vmatprep.subr.bf16.mxu0 0
        %658 = vmatpush1.bf16.msra.mxu0 0
        %659 = vmatprep.subr.bf16.mxu0 0
        %660 = vmatpush1.bf16.msra.mxu0 0
        %661 = vmatprep.subr.bf16.mxu0 0
        %662 = vmatpush1.bf16.msra.mxu0 0
        %663 = vmatprep.subr.bf16.mxu0 0
        %664 = vmatpush1.bf16.msra.mxu0 0
        %665 = vmatprep.subr.bf16.mxu0 0
        %666 = vmatpush1.bf16.msra.mxu0 0
        %667 = vmatprep.subr.bf16.mxu0 0
        %668 = vmatpush1.bf16.msra.mxu0 0
        %669 = vmatprep.subr.bf16.mxu0 0
        %670 = vmatpush1.bf16.msra.mxu0 0
        %671 = vmatprep.subr.bf16.mxu0 0
        %672 = vmatpush1.bf16.msra.mxu0 0
        %673 = vmatprep.subr.bf16.mxu0 0
        %674 = vmatpush1.bf16.msra.mxu0 0
        %675 = vmatprep.subr.bf16.mxu0 0
        %676 = vmatpush1.bf16.msra.mxu0 0
        %677 = vmatprep.mubr.bf16.mxu0 0
        %678 = vmatmul.mubr.bf16.gmra.mrb[0].mxu0 %v561
        %v679 = vpop.f32.mrb[0].mxu0
        %v680 = vadd.f32 0.0, %v679
        %v681 = vpop.f32.mrb[0].mxu0
        %v682 = vadd.f32 0.0, %v681
        %v683 = vpop.f32.mrb[0].mxu0
        %v684 = vpop.f32.mrb[0].mxu0
        %685 = vdwg.mxu0
        %v686 = vadd.f32 %v598, %v600
        %v687 = vadd.f32 %v686, %v639
        %v688 = vadd.f32 %v687, %v641
        %v689 = vadd.f32 %v688, %v680
        %v690 = vadd.f32 %v689, %v682
        %691 = vadd.xlane.f32.xlu0 %v690
        %v692 = vpop.xlane.xlu0 %691
        %v693 = vrot.slane %v692, 4
        %v694 = vadd.f32 %v692, %v693
        %v695 = vrot.slane %v694, 2
        %v696 = vadd.f32 %v694, %v695
        %v697 = vrot.slane %v696, 1
        %v698 = vadd.f32 %v696, %v697
        %s699 = vtos %v698
        %s700 = smul.f32 %s699, 0.00026041668
        %v701 = vmul.f32 %v598, %v598
        %v702 = vmul.f32 %v600, %v600
        %v703 = vmul.f32 %v639, %v639
        %v704 = vmul.f32 %v641, %v641
        %v705 = vmul.f32 %v680, %v680
        %v706 = vmul.f32 %v682, %v682
        %v707 = vadd.f32 %v701, %v702
        %v708 = vadd.f32 %v707, %v703
        %v709 = vadd.f32 %v708, %v704
        %v710 = vadd.f32 %v709, %v705
        %v711 = vadd.f32 %v710, %v706
        %712 = vadd.xlane.f32.xlu0 %v711
        %v713 = vpop.xlane.xlu0 %712
        %v714 = vrot.slane %v713, 4
        %v715 = vadd.f32 %v713, %v714
        %v716 = vrot.slane %v715, 2
        %v717 = vadd.f32 %v715, %v716
        %v718 = vrot.slane %v717, 1
        %v719 = vadd.f32 %v717, %v718
        %s720 = vtos %v719
        %s721 = smul.f32 %s720, 0.00026041668
        %s722 = smul.f32 %s700, %s700
        %s723 = ssub.f32 %s721, %s722
        %s724 = smax.f32 %s723, 0.0
        %s725 = sadd.f32 %s724, 1e-05
        %v726 = vstv %s725
        %v727 = vrsqrt.pop %v726
        %s728 = vtos %v727
        %v729 = vld [vmem:[#allocation8] sm:$0xff]
        %v730 = vld [vmem:[#allocation8 + $0x8] sm:$0xff]
        %v731 = vld [vmem:[#allocation8 + $0x10] sm:$0xff]
        %v732 = vld [vmem:[#allocation8 + $0x18] sm:$0xff]
        %v733 = vld [vmem:[#allocation8 + $0x20] sm:$0xff]
        %v734 = vld [vmem:[#allocation8 + $0x28] sm:$0xff]
        %v735 = vld [vmem:[#allocation8 + $0x30] sm:$0xff]
        %v736 = vld [vmem:[#allocation8 + $0x38] sm:$0xff]
        %v737 = vld [vmem:[#allocation8 + $0x40] sm:$0xff]
        %v738 = vld [vmem:[#allocation8 + $0x48] sm:$0xff]
        %v739 = vld [vmem:[#allocation8 + $0x50] sm:$0xff]
        %v740 = vld [vmem:[#allocation8 + $0x58] sm:$0xff]
        %v741 = vld [vmem:[#allocation8 + $0x60] sm:$0xff]
        %v742 = vld [vmem:[#allocation8 + $0x68] sm:$0xff]
        %v743 = vld [vmem:[#allocation8 + $0x70] sm:$0xff]
        %v744 = vld [vmem:[#allocation8 + $0x78] sm:$0xff]
        %v745 = vld [vmem:[#allocation8 + $0x80] sm:$0xff]
        %v746 = vld [vmem:[#allocation8 + $0x88] sm:$0xff]
        %v747 = vmul.f32 %v729, %v598
        %v748 = vmul.f32 %v730, %v600
        %v749 = vmul.f32 %v731, %v639
        %v750 = vmul.f32 %v732, %v641
        %v751 = vmul.f32 %v733, %v680
        %v752 = vmul.f32 %v734, %v682
        %v753 = vmul.f32 %v735, %v598
        %v754 = vmul.f32 %v736, %v600
        %v755 = vmul.f32 %v737, %v639
        %v756 = vmul.f32 %v738, %v641
        %v757 = vmul.f32 %v739, %v680
        %v758 = vmul.f32 %v740, %v682
        %v759 = vmul.f32 %v741, %v598
        %v760 = vmul.f32 %v742, %v600
        %v761 = vmul.f32 %v743, %v639
        %v762 = vmul.f32 %v744, %v641
        %v763 = vmul.f32 %v745, %v680
        %v764 = vmul.f32 %v746, %v682
        %v765 = vadd.f32 %v747, %v748
        %v766 = vadd.f32 %v765, %v749
        %v767 = vadd.f32 %v766, %v750
        %v768 = vadd.f32 %v767, %v751
        %v769 = vadd.f32 %v768, %v752
        %770 = vadd.xlane.f32.xlu0 %v769
        %v771 = vpop.xlane.xlu0 %770
        %v772 = vadd.f32 %v753, %v754
        %v773 = vadd.f32 %v772, %v755
        %v774 = vadd.f32 %v773, %v756
        %v775 = vadd.f32 %v774, %v757
        %v776 = vadd.f32 %v775, %v758
        %777 = vadd.xlane.f32.xlu0 %v776
        %v778 = vpop.xlane.xlu0 %777
        %v779 = vadd.f32 %v759, %v760
        %v780 = vadd.f32 %v779, %v761
        %v781 = vadd.f32 %v780, %v762
        %v782 = vadd.f32 %v781, %v763
        %v783 = vadd.f32 %v782, %v764
        %784 = vadd.xlane.f32.xlu0 %v783
        %v785 = vpop.xlane.xlu0 %784
        %v789 = vlaneseq
        %v790 = vshrl.u32 %v789, 7
        %v791 = vsub.s32 %v318, %v790
        %v792 = vrot.slane %v771, %v791
        %v793 = vlaneseq
        %v794 = vshrl.u32 %v793, 7
        %v795 = vsub.s32 %v318, %v794
        %v796 = vrot.slane %v778, %v795
        %v797 = vlaneseq
        %v798 = vshrl.u32 %v797, 7
        %v799 = vsub.s32 %v318, %v798
        %v800 = vrot.slane %v785, %v799
        %vm801 = vcmask 1041409
        %v802 = vsel %vm801, %v796, %v792
        %vm803 = vcmask 1042434
        %v804 = vsel %vm803, %v800, %v802
        %vm806 = vcmask 59392
        %v807 = vsel %vm806, %v804, 0.0
        %808 = vadd.xlane.f32.xlu0 %v807
        %v809 = vpop.xlane.xlu0 %808
        %v810 = vld [vmem:[%s5] sm:$0x7]
        %v811 = vstv %s700
        %v812 = vmul.f32 %v811, %v810
        %v813 = vsub.f32 %v809, %v812
        %v814 = vstv %s728
        %v815 = vmul.f32 %v814, %v813
        %817 = vrot.lane.b32.xlu0 %v810, 127
        %v818 = vpop.permute.xlu0 %817
        %v820 = vadd.f32 %v815, %v818
        %vm821 = vcmask 2048
        %v822 = vsel %vm821, %v820, -inf
        %v823 = vrot.slane %v822, 4
        %v824 = vmax.f32 %v822, %v823
        %v825 = vrot.slane %v824, 2
        %v826 = vmax.f32 %v824, %v825
        %v827 = vrot.slane %v826, 1
        %v828 = vmax.f32 %v826, %v827
        %v829 = vsub.f32 %v820, %v828
        %v830 = vmul.f32 %v829, 1.442695
        %v831 = vpow.pop %v830
        %v832 = vsel %vm821, %v831, 0.0
        %v833 = vrot.slane %v832, 4
        %v834 = vadd.f32 %v832, %v833
        %v835 = vrot.slane %v834, 2
        %v836 = vadd.f32 %v834, %v835
        %v837 = vrot.slane %v836, 1
        %v838 = vadd.f32 %v836, %v837
        %v839 = vrcp.pop %v838
        %v840 = vmul.f32 %v831, %v839
        %841 = vst.msk [vmem:[%s276] sm:$0x7] %vm821, %v840
        %p842 = scmp.lt.s32.totalorder %s27, 3
        %s843 = scalar_select %p842, %s27, 3
        %s844 = smul.addr %s843, 4
        %s845 = scalar_lea.vmem %s6, %s844
        // Predicated region
        $region53: #{tpu_custom_call.1} parent=39 // pred_check
          %p846 = pneg %p155
        $region54: #{tpu_custom_call.1} parent=39 // pred_check_branch
          %848 = sbr.rel (%p846) target = $region56
        $region55: #{tpu_custom_call.1} parent=39 // pred_region
          _
        $region56: #{tpu_custom_call.1} parent=39 // pred_fallthru
          _
      $region40: #{tpu_custom_call.1} parent=5 // pred_fallthru
        _
      %p849 = scmp.le.s32.totalorder 2, %s22
      // Predicated region
      $region57: #{tpu_custom_call.1} parent=5 // pred_check
        %p850 = pneg %p849
      $region58: #{tpu_custom_call.1} parent=5 // pred_check_branch
        %852 = sbr.rel (%p850) target = $region60
      $region59: #{tpu_custom_call.1} parent=5 // pred_region
        %s853 = ssub.s32 %s22, 2
        // Predicated region
        $region61: #{tpu_custom_call.1} parent=59 // pred_check
          %p854 = pneg %p161
        $region62: #{tpu_custom_call.1} parent=59 // pred_check_branch
          %856 = sbr.rel (%p854) target = $region64
        $region63: #{tpu_custom_call.1} parent=59 // pred_region
          %p857 = scmp.lt.s32.totalorder %s28, 3
          %s858 = scalar_select %p857, %s28, 3
          %s859 = smul.addr %s858, 4
          %s860 = scalar_lea.vmem %s6, %s859
        $region64: #{tpu_custom_call.1} parent=59 // pred_fallthru
          _
      $region60: #{tpu_custom_call.1} parent=5 // pred_fallthru
        _
    $region6: #{tpu_custom_call.1} parent=1 // loop_footer
      %s26 = sadd.s32 1, %s22
    $region7: #{tpu_custom_call.1} parent=1 // loop_footer_branch
      %21 = sbr.rel target = $region3
    $region8: #{tpu_custom_call.1} parent=1 // loop_exit
      _
    %861 = vsyncpa [#allocation5], 1
    %s862 = scalar_lea.sflag [#allocation5], 1
    %863 = vsyncpa %s862, 1
    %864 = vsyncpa [#allocation7], 1

</llo_original>
